<compile_context>
chip_gen: v7x
topology: tpu7x:2x2x1
jax: 0.10.0
libtpu: 0.0.40
codegen_flags: <defaults>
</compile_context>

<pallas_src>
import math
from functools import partial

import jax
import jax.numpy as jnp
from jax.experimental import pallas as pl
from jax.experimental.pallas import tpu as pltpu


def _round_up(x, m):
    return ((x + m - 1) // m) * m


def _vmem_capacity_bytes():
    """Physical VMEM per core; conservative (v7x) fallback if query fails."""
    try:
        info = pltpu.get_tpu_info()
        cap = getattr(info, "vmem_capacity_bytes", None)
        if cap:
            return int(cap)
    except Exception:
        pass
    return 64 * 1024 * 1024


def _pick_tile(dim, granule, cap):
    """Tile size for one matmul dim.

    Small dims are covered exactly (rounded to the layout granule); large dims
    pick the 128-step candidate <= cap with the least padding overshoot.
    """
    dim_r = _round_up(dim, granule)
    if dim_r <= cap:
        return dim_r
    step = max(granule, 128)
    candidates = list(range(cap, max(step, cap // 2) - 1, -step)) or [cap]
    return min(candidates, key=lambda t: (_round_up(dim, t) - dim, -t))


def _tile_footprint(tm, tn, tk, in_item, out_item, use_scratch):
    """Double-buffered x/W/bias/output tiles (+ optional f32 scratch)."""
    fp = 2 * (tm * tk + tk * tn) * in_item   # x and W tiles
    fp += 2 * tn * 4                         # bias tile (f32)
    fp += 2 * tm * tn * out_item             # output tile
    if use_scratch:
        fp += tm * tn * 4
    return fp


# ----------------------------- kernels --------------------------------------

def _linear_kernel_f32out(x_ref, w_ref, b_ref, o_ref):
    """f32 output: accumulate straight into the resident output block.

    x_ref: (tm, tk)  w_ref: (tk, tn) (already K-major)  b_ref: (1, tn) f32
    o_ref: (tm, tn) f32, resident across the k (reduction) grid axis.
    """
    k = pl.program_id(2)

    @pl.when(k == 0)
    def _():
        # Seed the accumulator with the bias: no epilogue pass needed.
        o_ref[...] = jnp.broadcast_to(b_ref[...], o_ref.shape)

    o_ref[...] += jnp.dot(x_ref[...], w_ref[...],
                          preferred_element_type=jnp.float32)


def _linear_kernel_scratch(x_ref, w_ref, b_ref, o_ref, acc_ref):
    """General output dtype: f32 VMEM scratch accumulator, one cast at the end."""
    k = pl.program_id(2)

    @pl.when(k == 0)
    def _():
        acc_ref[...] = jnp.broadcast_to(b_ref[...], acc_ref.shape)

    acc_ref[...] += jnp.dot(x_ref[...], w_ref[...],
                            preferred_element_type=jnp.float32)

    @pl.when(k == pl.num_programs(2) - 1)
    def _():
        o_ref[...] = acc_ref[...].astype(o_ref.dtype)


# ----------------------------- wrapper ---------------------------------------

def pcann_forward(x, weight, bias, *, compute_dtype=None, small_fallback=False):
    """pcann.forward: nn.Linear over the last axis.

    x: (..., K), weight: (N, K) (PyTorch layout), bias: (N,).
    compute_dtype: MXU input dtype (default bf16 for f32 inputs, f32 accumulation).
    """
    orig_shape = x.shape
    K = orig_shape[-1]
    N, K_w = weight.shape
    assert K_w == K, (weight.shape, K)
    M = int(math.prod(orig_shape[:-1])) if orig_shape[:-1] else 1

    out_dtype = x.dtype
    if compute_dtype is None:
        compute_dtype = (jnp.bfloat16 if jnp.dtype(x.dtype) == jnp.dtype(jnp.float32)
                         else x.dtype)
    in_item = jnp.dtype(compute_dtype).itemsize
    out_item = jnp.dtype(out_dtype).itemsize
    use_scratch = jnp.dtype(out_dtype) != jnp.dtype(jnp.float32)

    # Optional: tiny layers are faster through XLA's fused dot (128-padding +
    # ~0.35 us/step grid overhead dominate).  Off by default so the Pallas
    # path is always exercised here.
    if small_fallback and M * _round_up(N, 128) * _round_up(K, 128) < 256 ** 3:
        return (x @ weight.T + bias).astype(out_dtype)

    # --- generation-aware tile caps / VMEM budget ----------------------------
    vmem_cap = _vmem_capacity_bytes()
    big_vmem = vmem_cap >= 96 * 1024 * 1024          # v5e/v6e: 128 MiB physical
    tile_cap = 1024 if big_vmem else 512             # v7x: 64 MiB -> stay at 512
    vmem_budget = (100 if big_vmem else 48) * 1024 * 1024

    # --- tile selection (lane-dense output, minimal padding overshoot) -------
    m_gran = 16 if in_item == 2 else 8
    tm = _pick_tile(M, m_gran, tile_cap)
    tn = _pick_tile(N, 128, tile_cap)
    tk = _pick_tile(K, 128, tile_cap)

    # Keep the whole weight resident in VMEM when it is small: its block index
    # is then always (0, 0), so Pallas never re-DMAs it across i / k steps.
    N_r, K_r = _round_up(N, 128), _round_up(K, 128)
    if N_r * K_r * in_item <= 8 * 1024 * 1024:
        if _tile_footprint(tm, N_r, K_r, in_item, out_item,
                           use_scratch) <= vmem_budget:
            tn, tk = N_r, K_r

    # v7x megacore: make sure the parallel (i, j) grid has >= 2 blocks so both
    # TensorCores get work (no-op when M and N are both single-tile small).
    if pl.cdiv(M, tm) * pl.cdiv(N, tn) < 2:
        if M > m_gran and tm > m_gran:
            tm = _round_up(pl.cdiv(M, 2), m_gran)
        elif N > 128 and tn > 128:
            tn = _round_up(pl.cdiv(N, 2), 128)

    M_pad = _round_up(M, tm)
    N_pad = _round_up(N, tn)
    K_pad = _round_up(K, tk)

    # --- operand prep: pad to tile multiples, cast to the MXU dtype ----------
    # Zero-padded K contributes 0 to the contraction; padded M rows / N columns
    # are sliced off after the call.
    x2d = x.reshape(M, K)
    if (M_pad, K_pad) != (M, K):
        x2d = jnp.pad(x2d, ((0, M_pad - M), (0, K_pad - K)))
    x2d = x2d.astype(compute_dtype)

    # One-time HBM transpose of W to (K, N): the kernel contracts on the major
    # dim of both tiles (pure MXU, no per-tile vxpose), amortized over all
    # M_pad/tm row-tile reuses.
    w_t = weight.T
    if (K_pad, N_pad) != (K, N):
        w_t = jnp.pad(w_t, ((0, K_pad - K), (0, N_pad - N)))
    w_t = w_t.astype(compute_dtype)

    b2d = bias
    if N_pad != N:
        b2d = jnp.pad(b2d, (0, N_pad - N))
    b2d = b2d.reshape(1, N_pad).astype(jnp.float32)

    grid = (M_pad // tm, N_pad // tn, K_pad // tk)
    n_i, n_j, _ = grid

    tile_bytes = _tile_footprint(tm, tn, tk, in_item, out_item, use_scratch)
    vmem_limit = int(min(max(2 * tile_bytes, 16 * 1024 * 1024), vmem_budget))

    # Advisory cost: account for the actual refetch traffic
    # (x re-read per j-tile, W re-read per i-tile).
    cost = pl.CostEstimate(
        flops=2 * M_pad * N_pad * K_pad,
        transcendentals=0,
        bytes_accessed=int(M_pad * K_pad * in_item * n_j
                           + K_pad * N_pad * in_item * n_i
                           + N_pad * 4 * n_i
                           + M_pad * N_pad * out_item))

    kernel = _linear_kernel_scratch if use_scratch else _linear_kernel_f32out
    scratch_shapes = ([pltpu.VMEM((tm, tn), jnp.float32)] if use_scratch else [])

    out2d = pl.pallas_call(
        kernel,
        out_shape=jax.ShapeDtypeStruct((M_pad, N_pad), out_dtype),
        grid=grid,
        in_specs=[
            pl.BlockSpec((tm, tk), lambda i, j, k: (i, k)),   # x tile
            pl.BlockSpec((tk, tn), lambda i, j, k: (k, j)),   # W^T tile (K, N)
            pl.BlockSpec((1, tn), lambda i, j, k: (0, j)),    # bias tile
        ],
        out_specs=pl.BlockSpec((tm, tn), lambda i, j, k: (i, j)),
        scratch_shapes=scratch_shapes,
        compiler_params=pltpu.CompilerParams(
            dimension_semantics=("parallel", "parallel", "arbitrary"),
            vmem_limit_bytes=vmem_limit),
        cost_estimate=cost,
    )(x2d, w_t, b2d)

    out2d = out2d[:M, :N]
    return out2d.reshape(*orig_shape[:-1], N)


if __name__ == "__main__":
    # params['layers'] — only the first and last entries matter for pcann.
    layers = [32, 64, 16]
    in_features, out_features = layers[0], layers[-1]

    B, S = 2, 8
    key = jax.random.PRNGKey(0)
    kx, kw, kb = jax.random.split(key, 3)

    # Deterministic PyTorch-style Linear init: U(-1/sqrt(K), 1/sqrt(K)).
    bound = 1.0 / (in_features ** 0.5)
    weight = jax.random.uniform(kw, (out_features, in_features),
                                jnp.float32, -bound, bound)
    bias = jax.random.uniform(kb, (out_features,), jnp.float32, -bound, bound)
    x = jax.random.normal(kx, (B, S, in_features), jnp.float32)

    ref = x @ weight.T + bias

    # Default path: bf16 MXU inputs with f32 accumulation.
    out_bf16 = jax.jit(pcann_forward)(x, weight, bias)
    jax.block_until_ready(out_bf16)
    assert out_bf16.shape == (B, S, out_features)
    assert out_bf16.dtype == x.dtype
    # Compare against the same-precision reference (bf16-rounded inputs, f32 acc).
    ref_bf16 = (x.astype(jnp.bfloat16).astype(jnp.float32)
                @ weight.astype(jnp.bfloat16).astype(jnp.float32).T) + bias
    assert jnp.allclose(out_bf16, ref_bf16, atol=1e-3, rtol=1e-3), \
        float(jnp.max(jnp.abs(out_bf16 - ref_bf16)))
    # Loose semantic check against the exact f32 reference.
    assert jnp.allclose(out_bf16, ref, atol=5e-2, rtol=5e-2)

    # Exact-numerics path (f32 MXU inputs) matches the reference tightly.
    out_f32 = jax.jit(partial(pcann_forward, compute_dtype=jnp.float32))(
        x, weight, bias)
    jax.block_until_ready(out_f32)
    assert jnp.allclose(out_f32, ref, atol=1e-5, rtol=1e-5)

    print("KERNEL_OK")
</pallas_src>

<mosaic_0001>
module attributes {stable_mosaic.version = 11 : i64} {
  func.func @_linear_kernel_f32out(%arg0: i32, %arg1: i32, %arg2: i32, %arg3: memref<16x128xbf16, #tpu.memory_space<vmem>>, %arg4: memref<128x128xbf16, #tpu.memory_space<vmem>>, %arg5: memref<1x128xf32, #tpu.memory_space<vmem>>, %arg6: memref<16x128xf32, #tpu.memory_space<vmem>>) attributes {dimension_semantics = [#tpu.dimension_semantics<parallel>, #tpu.dimension_semantics<parallel>, #tpu.dimension_semantics<arbitrary>], iteration_bounds = array<i64: 1, 1, 1>, scalar_prefetch = 0 : i64, scratch_operands = 0 : i64, tpu.core_type = #tpu.core_type<tc>, window_params = [{transform_indices = @transform_0, window_bounds = array<i64: 16, 128>}, {transform_indices = @transform_1, window_bounds = array<i64: 128, 128>}, {transform_indices = @transform_2, window_bounds = array<i64: 1, 128>}, {transform_indices = @transform_3, window_bounds = array<i64: 16, 128>}]} {
    %c0_i32 = arith.constant 0 : i32
    %0 = arith.cmpi eq, %arg2, %c0_i32 : i32
    %1 = arith.extui %0 : i1 to i32
    %c0_i32_0 = arith.constant 0 : i32
    %2 = arith.cmpi ne, %1, %c0_i32_0 : i32
    scf.if %2 {
      %c0_8 = arith.constant 0 : index
      %c0_9 = arith.constant 0 : index
      %9 = vector.load %arg5[%c0_8, %c0_9] : memref<1x128xf32, #tpu.memory_space<vmem>>, vector<1x128xf32>
      %10 = vector.shape_cast %9 : vector<1x128xf32> to vector<1x128xf32>
      %11 = vector.broadcast %10 : vector<1x128xf32> to vector<16x128xf32>
      %c0_10 = arith.constant 0 : index
      %c0_11 = arith.constant 0 : index
      %12 = vector.load %arg6[%c0_10, %c0_11] : memref<16x128xf32, #tpu.memory_space<vmem>>, vector<16x128xf32>
      tpu.vector_store %arg6[%c0_10, %c0_11], %11 {strides = array<i32>} : memref<16x128xf32, #tpu.memory_space<vmem>>, vector<16x128xf32>,
    } else {
    }
    %c0 = arith.constant 0 : index
    %c0_1 = arith.constant 0 : index
    %3 = vector.load %arg6[%c0, %c0_1] : memref<16x128xf32, #tpu.memory_space<vmem>>, vector<16x128xf32>
    %c0_2 = arith.constant 0 : index
    %c0_3 = arith.constant 0 : index
    %4 = vector.load %arg3[%c0_2, %c0_3] : memref<16x128xbf16, #tpu.memory_space<vmem>>, vector<16x128xbf16>
    %c0_4 = arith.constant 0 : index
    %c0_5 = arith.constant 0 : index
    %5 = vector.load %arg4[%c0_4, %c0_5] : memref<128x128xbf16, #tpu.memory_space<vmem>>, vector<128x128xbf16>
    %cst = arith.constant dense<0.000000e+00> : vector<16x128xf32>
    %6 = tpu.matmul %4, %5, %cst {dimension_numbers = #tpu.dot_dimension_numbers<[1], [0], [0], [1], [0, 0, 1, 1], [], []>} : vector<16x128xbf16>, vector<128x128xbf16>, vector<16x128xf32> -> vector<16x128xf32>
    %7 = arith.addf %3, %6 : vector<16x128xf32>
    %c0_6 = arith.constant 0 : index
    %c0_7 = arith.constant 0 : index
    %8 = vector.load %arg6[%c0_6, %c0_7] : memref<16x128xf32, #tpu.memory_space<vmem>>, vector<16x128xf32>
    tpu.vector_store %arg6[%c0_6, %c0_7], %7 {strides = array<i32>} : memref<16x128xf32, #tpu.memory_space<vmem>>, vector<16x128xf32>,
    return
  }
  func.func @transform_0(%arg0: i32, %arg1: i32, %arg2: i32) -> (i32, i32) {
    %c0_i32 = arith.constant 0 : i32
    return %arg0, %arg2 : i32, i32
  }
  func.func @transform_1(%arg0: i32, %arg1: i32, %arg2: i32) -> (i32, i32) {
    %c0_i32 = arith.constant 0 : i32
    return %arg2, %arg1 : i32, i32
  }
  func.func @transform_2(%arg0: i32, %arg1: i32, %arg2: i32) -> (i32, i32) {
    %c0_i32 = arith.constant 0 : i32
    %c0_i32_0 = arith.constant 0 : i32
    return %c0_i32, %arg1 : i32, i32
  }
  func.func @transform_3(%arg0: i32, %arg1: i32, %arg2: i32) -> (i32, i32) {
    %c0_i32 = arith.constant 0 : i32
    return %arg0, %arg1 : i32, i32
  }
}

</mosaic_0001>

<llo_original>
// kernel: pcann_forward.1
$region0: #{pcann_forward.1}
  #allocation0 [shape = 'u32[]', space=smem, size = 0x4, offset = 0x4, fixed_abs, tag = 'smem constant byte address 0x4 - core index']
  #allocation1 [shape = 'u32[144,128]{1,0:T(1,128)}', space=vmem, size = 0x12000, scoped, tag = 'internal scratch']
  %s0 = inlined_call_operand.vmem [shape: bf16[16,128], index: 0, kind: input, shape index: {}]
  %s1 = inlined_call_operand.vmem [shape: bf16[128,128], index: 1, kind: input, shape index: {}]
  %s2 = inlined_call_operand.vmem [shape: f32[1,128], index: 2, kind: input, shape index: {}]
  %s3 = inlined_call_operand.vmem [shape: f32[16,128], index: 3, kind: output, shape index: {}]
  %s4 = sld [smem:[#allocation0]]
  $region26: #{pcann_forward.1} parent=0
    _
  %s6 = ssub.s32 1, %s4
  %s7 = scalar_select 0, %s6, %s4
  // Predicated region
  $region2: #{pcann_forward.1} parent=0 // pred_check
    _
  $region3: #{pcann_forward.1} parent=0 // pred_check_branch
    %9 = sbr.rel (0) target = $region5
  $region4: #{pcann_forward.1} parent=0 // pred_region
    _
  $region5: #{pcann_forward.1} parent=0 // pred_fallthru
    _
  // Predicated region
  $region6: #{pcann_forward.1} parent=0 // pred_check
    _
  $region7: #{pcann_forward.1} parent=0 // pred_check_branch
    %11 = sbr.rel (0) target = $region9
  $region8: #{pcann_forward.1} parent=0 // pred_region
    _
  $region9: #{pcann_forward.1} parent=0 // pred_fallthru
    _
  // Predicated region
  $region10: #{pcann_forward.1} parent=0 // pred_check
    _
  $region11: #{pcann_forward.1} parent=0 // pred_check_branch
    %13 = sbr.rel (0) target = $region13
  $region12: #{pcann_forward.1} parent=0 // pred_region
    _
  $region13: #{pcann_forward.1} parent=0 // pred_fallthru
    _
  %p15 = scmp.eq.s32.totalorder 0, 0
  // Predicated region
  $region14: #{pcann_forward.1} parent=0 // pred_check
    %p16 = pneg %p15
  $region15: #{pcann_forward.1} parent=0 // pred_check_branch
    %18 = sbr.rel (%p16) target = $region17
  $region16: #{pcann_forward.1} parent=0 // pred_region
    %v19 = vld [vmem:[%s2] sm:$0x1]
    %v21 = vlaneseq
    %v22 = vshrl.u32 %v21, 7
    %v23 = vsub.s32 0, %v22
    %v24 = vrot.slane %v19, %v23
    %26 = vst [vmem:[%s3] sm:$0xff] %v24
    %27 = vst [vmem:[%s3 + $0x8] sm:$0xff] %v24
  $region17: #{pcann_forward.1} parent=0 // pred_fallthru
    _
  %v28 = vld [vmem:[%s3] sm:$0xff]
  %v29 = vld [vmem:[%s3 + $0x8] sm:$0xff]
  %v30 = vld [vmem:[%s0] sm:$0xf]
  %v31 = vld [vmem:[%s0 + $0x4] sm:$0xf]
  %v32 = vld [vmem:[%s1] sm:$0xf]
  %v33 = vld [vmem:[%s1 + $0x4] sm:$0xf]
  %v34 = vld [vmem:[%s1 + $0x8] sm:$0xf]
  %v35 = vld [vmem:[%s1 + $0xc] sm:$0xf]
  %v36 = vld [vmem:[%s1 + $0x10] sm:$0xf]
  %v37 = vld [vmem:[%s1 + $0x14] sm:$0xf]
  %v38 = vld [vmem:[%s1 + $0x18] sm:$0xf]
  %v39 = vld [vmem:[%s1 + $0x1c] sm:$0xf]
  %v40 = vld [vmem:[%s1 + $0x20] sm:$0xf]
  %v41 = vld [vmem:[%s1 + $0x24] sm:$0xf]
  %v42 = vld [vmem:[%s1 + $0x28] sm:$0xf]
  %v43 = vld [vmem:[%s1 + $0x2c] sm:$0xf]
  %v44 = vld [vmem:[%s1 + $0x30] sm:$0xf]
  %v45 = vld [vmem:[%s1 + $0x34] sm:$0xf]
  %v46 = vld [vmem:[%s1 + $0x38] sm:$0xf]
  %v47 = vld [vmem:[%s1 + $0x3c] sm:$0xf]
  %v50 = vunpack.c.l.b16 %v30
  %v51 = vunpack.c.l.b16 %v31
  %v52 = vpack.c.b16 %v51, %v50
  %v70 = vunpack.c.l.b16 %v32
  %v71 = vunpack.c.l.b16 %v33
  %v72 = vunpack.c.l.b16 %v34
  %v73 = vunpack.c.l.b16 %v35
  %v74 = vunpack.c.l.b16 %v36
  %v75 = vunpack.c.l.b16 %v37
  %v76 = vunpack.c.l.b16 %v38
  %v77 = vunpack.c.l.b16 %v39
  %v78 = vunpack.c.l.b16 %v40
  %v79 = vunpack.c.l.b16 %v41
  %v80 = vunpack.c.l.b16 %v42
  %v81 = vunpack.c.l.b16 %v43
  %v82 = vunpack.c.l.b16 %v44
  %v83 = vunpack.c.l.b16 %v45
  %v84 = vunpack.c.l.b16 %v46
  %v85 = vunpack.c.l.b16 %v47
  %v86 = vpack.c.b16 %v71, %v70
  %v87 = vpack.c.b16 %v73, %v72
  %v88 = vpack.c.b16 %v75, %v74
  %v89 = vpack.c.b16 %v77, %v76
  %v90 = vpack.c.b16 %v79, %v78
  %v91 = vpack.c.b16 %v81, %v80
  %v92 = vpack.c.b16 %v83, %v82
  %v93 = vpack.c.b16 %v85, %v84
  %102 = vmatprep.subr.bf16.mxu0 0
  %103 = vmatpush1.bf16.msra.mxu0 %v86
  %104 = vmatprep.subr.bf16.mxu0 0
  %105 = vmatpush1.bf16.msra.mxu0 %v87
  %106 = vmatprep.subr.bf16.mxu0 0
  %107 = vmatpush1.bf16.msra.mxu0 %v88
  %108 = vmatprep.subr.bf16.mxu0 0
  %109 = vmatpush1.bf16.msra.mxu0 %v89
  %110 = vmatprep.subr.bf16.mxu0 0
  %111 = vmatpush1.bf16.msra.mxu0 %v90
  %112 = vmatprep.subr.bf16.mxu0 0
  %113 = vmatpush1.bf16.msra.mxu0 %v91
  %114 = vmatprep.subr.bf16.mxu0 0
  %115 = vmatpush1.bf16.msra.mxu0 %v92
  %116 = vmatprep.subr.bf16.mxu0 0
  %117 = vmatpush1.bf16.msra.mxu0 %v93
  %118 = vmatprep.subr.bf16.mxu0 0
  %119 = vmatpush1.bf16.msra.mxu0 0
  %120 = vmatprep.subr.bf16.mxu0 0
  %121 = vmatpush1.bf16.msra.mxu0 0
  %122 = vmatprep.subr.bf16.mxu0 0
  %123 = vmatpush1.bf16.msra.mxu0 0
  %124 = vmatprep.subr.bf16.mxu0 0
  %125 = vmatpush1.bf16.msra.mxu0 0
  %126 = vmatprep.subr.bf16.mxu0 0
  %127 = vmatpush1.bf16.msra.mxu0 0
  %128 = vmatprep.subr.bf16.mxu0 0
  %129 = vmatpush1.bf16.msra.mxu0 0
  %130 = vmatprep.subr.bf16.mxu0 0
  %131 = vmatpush1.bf16.msra.mxu0 0
  %132 = vmatprep.subr.bf16.mxu0 0
  %133 = vmatpush1.bf16.msra.mxu0 0
  %134 = vmatprep.mubr.bf16.mxu0 0
  %135 = vmatmul.mubr.bf16.gmra.mrb[0].mxu0 %v52
  %v136 = vpop.f32.mrb[0].mxu0
  %v137 = vadd.f32 0.0, %v136
  %v138 = vpop.f32.mrb[0].mxu0
  %v139 = vpop.f32.mrb[0].mxu0
  %v140 = vadd.f32 0.0, %v139
  %v141 = vpop.f32.mrb[0].mxu0
  %142 = vdwg.mxu0
  %v143 = vadd.f32 %v28, %v137
  %v144 = vadd.f32 %v29, %v140
  %145 = vst [vmem:[%s3] sm:$0xff] %v143
  %146 = vst [vmem:[%s3 + $0x8] sm:$0xff] %v144
  // Predicated region
  $region18: #{pcann_forward.1} parent=0 // pred_check
    _
  $region19: #{pcann_forward.1} parent=0 // pred_check_branch
    %148 = sbr.rel (0) target = $region21
  $region20: #{pcann_forward.1} parent=0 // pred_region
    _
  $region21: #{pcann_forward.1} parent=0 // pred_fallthru
    _
  // Predicated region
  $region22: #{pcann_forward.1} parent=0 // pred_check
    _
  $region23: #{pcann_forward.1} parent=0 // pred_check_branch
    %150 = sbr.rel (0) target = $region25
  $region24: #{pcann_forward.1} parent=0 // pred_region
    _
  $region25: #{pcann_forward.1} parent=0 // pred_fallthru
    _

</llo_original>
